<compile_context>
chip_gen: v6e
topology: v6e:2x2x1
jax: 0.10.0
libtpu: 0.0.40
codegen_flags: <defaults>
</compile_context>

<pallas_src>
import jax
import jax.numpy as jnp
from jax.experimental import pallas as pl
from jax.experimental.pallas import tpu as pltpu

_LANE = 128      # lane width
_CHUNK_S = 64    # sublanes per inner compute chunk (64*128 f32 = 32 KiB/channel)


def _cdiv(a, b):
    return (a + b - 1) // b


def _round_up(a, b):
    return _cdiv(a, b) * b


def _make_outconv_kernel(c_out, c_in, tile_s):
    """Build a kernel for a (C_in, tile_s, 128) -> (C_out, tile_s, 128) block."""
    n_full = tile_s // _CHUNK_S
    rem = tile_s % _CHUNK_S

    def kernel(w_ref, b_ref, x_ref, o_ref):
        # w_ref: SMEM (C_out, C_in) f32, b_ref: SMEM (C_out,) f32
        # x_ref: VMEM (C_in, tile_s, 128), o_ref: VMEM (C_out, tile_s, 128)
        # Hoist the tiny scalar weights/bias out of the chunk loop.
        w = [[w_ref[co, ci] for ci in range(c_in)] for co in range(c_out)]
        b = [b_ref[co] for co in range(c_out)]

        def do_chunk(s0, cs):
            # One (cs, 128) sub-chunk: dense VPU FMAs + EUP tanh, full stores.
            for co in range(c_out):
                acc = x_ref[0, pl.ds(s0, cs), :] * w[co][0] + b[co]
                for ci in range(1, c_in):
                    acc = acc + x_ref[ci, pl.ds(s0, cs), :] * w[co][ci]
                o_ref[co, pl.ds(s0, cs), :] = jnp.tanh(acc).astype(o_ref.dtype)

        if n_full > 0:
            def body(i, carry):
                s0 = pl.multiple_of(i * _CHUNK_S, _CHUNK_S)
                do_chunk(s0, _CHUNK_S)
                return carry
            jax.lax.fori_loop(0, n_full, body, 0)
        if rem > 0:
            do_chunk(n_full * _CHUNK_S, rem)

    return kernel


def out_conv(x_nchw, weight, bias, *, max_tile_s=2048):
    """1x1 Conv2d + Tanh (PyTorch OutConv forward).

    x_nchw : (N, C_in, H, W) float32
    weight : (C_out, C_in) or (C_out, C_in, 1, 1)
    bias   : (C_out,)
    returns: (N, C_out, H, W)
    """
    if weight.ndim == 4:                       # accept raw Conv2d weight
        weight = weight[:, :, 0, 0]
    N, C_in, H, W = x_nchw.shape
    C_out = weight.shape[0]
    HW = H * W

    # Free view to (N, C_in, HW); pad only up to the lane width (<=127 elems)
    # if needed, then make the spatial axis sublane-dense: (S_total, 128).
    x3 = x_nchw.reshape(N, C_in, HW)
    hw_aligned = _round_up(HW, _LANE)
    if hw_aligned != HW:
        x3 = jnp.pad(x3, ((0, 0), (0, 0), (0, hw_aligned - HW)))
    S_total = hw_aligned // _LANE
    x4 = x3.reshape(N, C_in, S_total, _LANE)

    # Tile the sublane axis into large blocks (multiple of the inner chunk so
    # non-final tiles are a multiple of 8 sublanes). A ragged final tile is
    # fine: the op is per-pixel, so Pallas' padded reads / dropped OOB writes
    # on the last block are harmless.
    if S_total <= max_tile_s:
        tile_s, n_tiles = S_total, 1
    else:
        n_tiles = _cdiv(S_total, max_tile_s)
        tile_s = _round_up(_cdiv(S_total, n_tiles), _CHUNK_S)
        n_tiles = _cdiv(S_total, tile_s)

    # v7x has 2 TensorCores: ensure the 'parallel' grid has >= 2 steps.
    if N * n_tiles < 2 and S_total >= 16:
        tile_s = _round_up(_cdiv(S_total, 2), 8)
        n_tiles = _cdiv(S_total, tile_s)

    w_smem = weight.astype(jnp.float32)        # (C_out, C_in) scalars -> SMEM
    b_smem = bias.astype(jnp.float32)          # (C_out,)

    kernel = _make_outconv_kernel(C_out, C_in, tile_s)

    out = pl.pallas_call(
        kernel,
        out_shape=jax.ShapeDtypeStruct((N, C_out, S_total, _LANE), x_nchw.dtype),
        grid_spec=pltpu.PrefetchScalarGridSpec(
            num_scalar_prefetch=2,             # weight + bias land in SMEM
            grid=(N, n_tiles),
            in_specs=[
                # (batch squeezed, full C_in, sublane tile, full lane width)
                pl.BlockSpec((None, C_in, tile_s, _LANE),
                             lambda n, t, w_r, b_r: (n, 0, t, 0)),
            ],
            out_specs=pl.BlockSpec((None, C_out, tile_s, _LANE),
                                   lambda n, t, w_r, b_r: (n, 0, t, 0)),
        ),
        compiler_params=pltpu.CompilerParams(
            # Both grid axes independent -> shard across TensorCores.
            dimension_semantics=("parallel", "parallel"),
            # Big blocks need > v5e's 16 MiB default; stay < v7x's 64 MiB VMEM.
            vmem_limit_bytes=48 * 1024 * 1024,
        ),
    )(w_smem, b_smem, x4)

    out = out.reshape(N, C_out, hw_aligned)
    if hw_aligned != HW:
        out = out[:, :, :HW]
    return out.reshape(N, C_out, H, W)


if __name__ == "__main__":
    key = jax.random.PRNGKey(0)
    kx, kw, kb = jax.random.split(key, 3)

    N, C_in, C_out, H, W = 2, 4, 3, 16, 16

    x = jax.random.normal(kx, (N, C_in, H, W), dtype=jnp.float32)
    weight = jax.random.normal(kw, (C_out, C_in), dtype=jnp.float32) * 0.1
    bias = jax.random.normal(kb, (C_out,), dtype=jnp.float32) * 0.1

    y = jax.block_until_ready(out_conv(x, weight, bias))

    # Reference: 1x1 conv == per-pixel channel matmul, then tanh.
    ref = jnp.tanh(
        jnp.einsum("nchw,oc->nohw", x, weight) + bias[None, :, None, None]
    )
    assert y.shape == (N, C_out, H, W)
    assert jnp.allclose(y, ref, atol=1e-5, rtol=1e-5)

    print("KERNEL_OK")
</pallas_src>

<mosaic_0001>
module attributes {stable_mosaic.version = 11 : i64} {
  func.func @kernel(%arg0: i32, %arg1: i32, %arg2: memref<3x4xf32, #tpu.memory_space<smem>>, %arg3: memref<3xf32, #tpu.memory_space<smem>>, %arg4: memref<1x4x2x128xf32, #tpu.memory_space<vmem>>, %arg5: memref<1x3x2x128xf32, #tpu.memory_space<vmem>>) attributes {dimension_semantics = [#tpu.dimension_semantics<parallel>, #tpu.dimension_semantics<parallel>], iteration_bounds = array<i64: 2, 1>, scalar_prefetch = 2 : i64, scratch_operands = 0 : i64, tpu.core_type = #tpu.core_type<tc>, window_params = [{transform_indices = @transform_0, window_bounds = array<i64: 1, 4, 2, 128>}, {transform_indices = @transform_1, window_bounds = array<i64: 1, 3, 2, 128>}]} {
    %c0 = arith.constant 0 : index
    %c0_0 = arith.constant 0 : index
    %0 = memref.load %arg2[%c0, %c0_0] : memref<3x4xf32, #tpu.memory_space<smem>>
    %c0_1 = arith.constant 0 : index
    %c1 = arith.constant 1 : index
    %1 = memref.load %arg2[%c0_1, %c1] : memref<3x4xf32, #tpu.memory_space<smem>>
    %c0_2 = arith.constant 0 : index
    %c2 = arith.constant 2 : index
    %2 = memref.load %arg2[%c0_2, %c2] : memref<3x4xf32, #tpu.memory_space<smem>>
    %c0_3 = arith.constant 0 : index
    %c3 = arith.constant 3 : index
    %3 = memref.load %arg2[%c0_3, %c3] : memref<3x4xf32, #tpu.memory_space<smem>>
    %c1_4 = arith.constant 1 : index
    %c0_5 = arith.constant 0 : index
    %4 = memref.load %arg2[%c1_4, %c0_5] : memref<3x4xf32, #tpu.memory_space<smem>>
    %c1_6 = arith.constant 1 : index
    %c1_7 = arith.constant 1 : index
    %5 = memref.load %arg2[%c1_6, %c1_7] : memref<3x4xf32, #tpu.memory_space<smem>>
    %c1_8 = arith.constant 1 : index
    %c2_9 = arith.constant 2 : index
    %6 = memref.load %arg2[%c1_8, %c2_9] : memref<3x4xf32, #tpu.memory_space<smem>>
    %c1_10 = arith.constant 1 : index
    %c3_11 = arith.constant 3 : index
    %7 = memref.load %arg2[%c1_10, %c3_11] : memref<3x4xf32, #tpu.memory_space<smem>>
    %c2_12 = arith.constant 2 : index
    %c0_13 = arith.constant 0 : index
    %8 = memref.load %arg2[%c2_12, %c0_13] : memref<3x4xf32, #tpu.memory_space<smem>>
    %c2_14 = arith.constant 2 : index
    %c1_15 = arith.constant 1 : index
    %9 = memref.load %arg2[%c2_14, %c1_15] : memref<3x4xf32, #tpu.memory_space<smem>>
    %c2_16 = arith.constant 2 : index
    %c2_17 = arith.constant 2 : index
    %10 = memref.load %arg2[%c2_16, %c2_17] : memref<3x4xf32, #tpu.memory_space<smem>>
    %c2_18 = arith.constant 2 : index
    %c3_19 = arith.constant 3 : index
    %11 = memref.load %arg2[%c2_18, %c3_19] : memref<3x4xf32, #tpu.memory_space<smem>>
    %c0_20 = arith.constant 0 : index
    %12 = memref.load %arg3[%c0_20] : memref<3xf32, #tpu.memory_space<smem>>
    %c1_21 = arith.constant 1 : index
    %13 = memref.load %arg3[%c1_21] : memref<3xf32, #tpu.memory_space<smem>>
    %c2_22 = arith.constant 2 : index
    %14 = memref.load %arg3[%c2_22] : memref<3xf32, #tpu.memory_space<smem>>
    %c0_23 = arith.constant 0 : index
    %c0_24 = arith.constant 0 : index
    %c0_25 = arith.constant 0 : index
    %c0_26 = arith.constant 0 : index
    %15 = vector.load %arg4[%c0_23, %c0_24, %c0_25, %c0_26] : memref<1x4x2x128xf32, #tpu.memory_space<vmem>>, vector<1x1x2x128xf32>
    %16 = vector.shape_cast %15 : vector<1x1x2x128xf32> to vector<2x128xf32>
    %17 = vector.broadcast %0 : f32 to vector<2x128xf32>
    %18 = arith.mulf %16, %17 : vector<2x128xf32>
    %19 = vector.broadcast %12 : f32 to vector<2x128xf32>
    %20 = arith.addf %18, %19 : vector<2x128xf32>
    %c0_27 = arith.constant 0 : index
    %c1_28 = arith.constant 1 : index
    %c0_29 = arith.constant 0 : index
    %c0_30 = arith.constant 0 : index
    %21 = vector.load %arg4[%c0_27, %c1_28, %c0_29, %c0_30] : memref<1x4x2x128xf32, #tpu.memory_space<vmem>>, vector<1x1x2x128xf32>
    %22 = vector.shape_cast %21 : vector<1x1x2x128xf32> to vector<2x128xf32>
    %23 = vector.broadcast %1 : f32 to vector<2x128xf32>
    %24 = arith.mulf %22, %23 : vector<2x128xf32>
    %25 = arith.addf %20, %24 : vector<2x128xf32>
    %c0_31 = arith.constant 0 : index
    %c2_32 = arith.constant 2 : index
    %c0_33 = arith.constant 0 : index
    %c0_34 = arith.constant 0 : index
    %26 = vector.load %arg4[%c0_31, %c2_32, %c0_33, %c0_34] : memref<1x4x2x128xf32, #tpu.memory_space<vmem>>, vector<1x1x2x128xf32>
    %27 = vector.shape_cast %26 : vector<1x1x2x128xf32> to vector<2x128xf32>
    %28 = vector.broadcast %2 : f32 to vector<2x128xf32>
    %29 = arith.mulf %27, %28 : vector<2x128xf32>
    %30 = arith.addf %25, %29 : vector<2x128xf32>
    %c0_35 = arith.constant 0 : index
    %c3_36 = arith.constant 3 : index
    %c0_37 = arith.constant 0 : index
    %c0_38 = arith.constant 0 : index
    %31 = vector.load %arg4[%c0_35, %c3_36, %c0_37, %c0_38] : memref<1x4x2x128xf32, #tpu.memory_space<vmem>>, vector<1x1x2x128xf32>
    %32 = vector.shape_cast %31 : vector<1x1x2x128xf32> to vector<2x128xf32>
    %33 = vector.broadcast %3 : f32 to vector<2x128xf32>
    %34 = arith.mulf %32, %33 : vector<2x128xf32>
    %35 = arith.addf %30, %34 : vector<2x128xf32>
    %36 = math.tanh %35 : vector<2x128xf32>
    %c0_39 = arith.constant 0 : index
    %c0_40 = arith.constant 0 : index
    %c0_41 = arith.constant 0 : index
    %c0_42 = arith.constant 0 : index
    %37 = vector.load %arg5[%c0_39, %c0_40, %c0_41, %c0_42] : memref<1x3x2x128xf32, #tpu.memory_space<vmem>>, vector<1x1x2x128xf32>
    %38 = vector.shape_cast %37 : vector<1x1x2x128xf32> to vector<2x128xf32>
    %39 = vector.shape_cast %36 : vector<2x128xf32> to vector<1x1x2x128xf32>
    tpu.vector_store %arg5[%c0_39, %c0_40, %c0_41, %c0_42], %39 {strides = array<i32>} : memref<1x3x2x128xf32, #tpu.memory_space<vmem>>, vector<1x1x2x128xf32>,
    %c0_43 = arith.constant 0 : index
    %c0_44 = arith.constant 0 : index
    %c0_45 = arith.constant 0 : index
    %c0_46 = arith.constant 0 : index
    %40 = vector.load %arg4[%c0_43, %c0_44, %c0_45, %c0_46] : memref<1x4x2x128xf32, #tpu.memory_space<vmem>>, vector<1x1x2x128xf32>
    %41 = vector.shape_cast %40 : vector<1x1x2x128xf32> to vector<2x128xf32>
    %42 = vector.broadcast %4 : f32 to vector<2x128xf32>
    %43 = arith.mulf %41, %42 : vector<2x128xf32>
    %44 = vector.broadcast %13 : f32 to vector<2x128xf32>
    %45 = arith.addf %43, %44 : vector<2x128xf32>
    %c0_47 = arith.constant 0 : index
    %c1_48 = arith.constant 1 : index
    %c0_49 = arith.constant 0 : index
    %c0_50 = arith.constant 0 : index
    %46 = vector.load %arg4[%c0_47, %c1_48, %c0_49, %c0_50] : memref<1x4x2x128xf32, #tpu.memory_space<vmem>>, vector<1x1x2x128xf32>
    %47 = vector.shape_cast %46 : vector<1x1x2x128xf32> to vector<2x128xf32>
    %48 = vector.broadcast %5 : f32 to vector<2x128xf32>
    %49 = arith.mulf %47, %48 : vector<2x128xf32>
    %50 = arith.addf %45, %49 : vector<2x128xf32>
    %c0_51 = arith.constant 0 : index
    %c2_52 = arith.constant 2 : index
    %c0_53 = arith.constant 0 : index
    %c0_54 = arith.constant 0 : index
    %51 = vector.load %arg4[%c0_51, %c2_52, %c0_53, %c0_54] : memref<1x4x2x128xf32, #tpu.memory_space<vmem>>, vector<1x1x2x128xf32>
    %52 = vector.shape_cast %51 : vector<1x1x2x128xf32> to vector<2x128xf32>
    %53 = vector.broadcast %6 : f32 to vector<2x128xf32>
    %54 = arith.mulf %52, %53 : vector<2x128xf32>
    %55 = arith.addf %50, %54 : vector<2x128xf32>
    %c0_55 = arith.constant 0 : index
    %c3_56 = arith.constant 3 : index
    %c0_57 = arith.constant 0 : index
    %c0_58 = arith.constant 0 : index
    %56 = vector.load %arg4[%c0_55, %c3_56, %c0_57, %c0_58] : memref<1x4x2x128xf32, #tpu.memory_space<vmem>>, vector<1x1x2x128xf32>
    %57 = vector.shape_cast %56 : vector<1x1x2x128xf32> to vector<2x128xf32>
    %58 = vector.broadcast %7 : f32 to vector<2x128xf32>
    %59 = arith.mulf %57, %58 : vector<2x128xf32>
    %60 = arith.addf %55, %59 : vector<2x128xf32>
    %61 = math.tanh %60 : vector<2x128xf32>
    %c0_59 = arith.constant 0 : index
    %c1_60 = arith.constant 1 : index
    %c0_61 = arith.constant 0 : index
    %c0_62 = arith.constant 0 : index
    %62 = vector.load %arg5[%c0_59, %c1_60, %c0_61, %c0_62] : memref<1x3x2x128xf32, #tpu.memory_space<vmem>>, vector<1x1x2x128xf32>
    %63 = vector.shape_cast %62 : vector<1x1x2x128xf32> to vector<2x128xf32>
    %64 = vector.shape_cast %61 : vector<2x128xf32> to vector<1x1x2x128xf32>
    tpu.vector_store %arg5[%c0_59, %c1_60, %c0_61, %c0_62], %64 {strides = array<i32>} : memref<1x3x2x128xf32, #tpu.memory_space<vmem>>, vector<1x1x2x128xf32>,
    %c0_63 = arith.constant 0 : index
    %c0_64 = arith.constant 0 : index
    %c0_65 = arith.constant 0 : index
    %c0_66 = arith.constant 0 : index
    %65 = vector.load %arg4[%c0_63, %c0_64, %c0_65, %c0_66] : memref<1x4x2x128xf32, #tpu.memory_space<vmem>>, vector<1x1x2x128xf32>
    %66 = vector.shape_cast %65 : vector<1x1x2x128xf32> to vector<2x128xf32>
    %67 = vector.broadcast %8 : f32 to vector<2x128xf32>
    %68 = arith.mulf %66, %67 : vector<2x128xf32>
    %69 = vector.broadcast %14 : f32 to vector<2x128xf32>
    %70 = arith.addf %68, %69 : vector<2x128xf32>
    %c0_67 = arith.constant 0 : index
    %c1_68 = arith.constant 1 : index
    %c0_69 = arith.constant 0 : index
    %c0_70 = arith.constant 0 : index
    %71 = vector.load %arg4[%c0_67, %c1_68, %c0_69, %c0_70] : memref<1x4x2x128xf32, #tpu.memory_space<vmem>>, vector<1x1x2x128xf32>
    %72 = vector.shape_cast %71 : vector<1x1x2x128xf32> to vector<2x128xf32>
    %73 = vector.broadcast %9 : f32 to vector<2x128xf32>
    %74 = arith.mulf %72, %73 : vector<2x128xf32>
    %75 = arith.addf %70, %74 : vector<2x128xf32>
    %c0_71 = arith.constant 0 : index
    %c2_72 = arith.constant 2 : index
    %c0_73 = arith.constant 0 : index
    %c0_74 = arith.constant 0 : index
    %76 = vector.load %arg4[%c0_71, %c2_72, %c0_73, %c0_74] : memref<1x4x2x128xf32, #tpu.memory_space<vmem>>, vector<1x1x2x128xf32>
    %77 = vector.shape_cast %76 : vector<1x1x2x128xf32> to vector<2x128xf32>
    %78 = vector.broadcast %10 : f32 to vector<2x128xf32>
    %79 = arith.mulf %77, %78 : vector<2x128xf32>
    %80 = arith.addf %75, %79 : vector<2x128xf32>
    %c0_75 = arith.constant 0 : index
    %c3_76 = arith.constant 3 : index
    %c0_77 = arith.constant 0 : index
    %c0_78 = arith.constant 0 : index
    %81 = vector.load %arg4[%c0_75, %c3_76, %c0_77, %c0_78] : memref<1x4x2x128xf32, #tpu.memory_space<vmem>>, vector<1x1x2x128xf32>
    %82 = vector.shape_cast %81 : vector<1x1x2x128xf32> to vector<2x128xf32>
    %83 = vector.broadcast %11 : f32 to vector<2x128xf32>
    %84 = arith.mulf %82, %83 : vector<2x128xf32>
    %85 = arith.addf %80, %84 : vector<2x128xf32>
    %86 = math.tanh %85 : vector<2x128xf32>
    %c0_79 = arith.constant 0 : index
    %c2_80 = arith.constant 2 : index
    %c0_81 = arith.constant 0 : index
    %c0_82 = arith.constant 0 : index
    %87 = vector.load %arg5[%c0_79, %c2_80, %c0_81, %c0_82] : memref<1x3x2x128xf32, #tpu.memory_space<vmem>>, vector<1x1x2x128xf32>
    %88 = vector.shape_cast %87 : vector<1x1x2x128xf32> to vector<2x128xf32>
    %89 = vector.shape_cast %86 : vector<2x128xf32> to vector<1x1x2x128xf32>
    tpu.vector_store %arg5[%c0_79, %c2_80, %c0_81, %c0_82], %89 {strides = array<i32>} : memref<1x3x2x128xf32, #tpu.memory_space<vmem>>, vector<1x1x2x128xf32>,
    return
  }
  func.func @transform_0(%arg0: i32, %arg1: i32, %arg2: memref<3x4xf32, #tpu.memory_space<smem>>, %arg3: memref<3xf32, #tpu.memory_space<smem>>) -> (i32, i32, i32, i32) {
    %c0_i32 = arith.constant 0 : i32
    %c0_i32_0 = arith.constant 0 : i32
    %c0_i32_1 = arith.constant 0 : i32
    return %arg0, %c0_i32, %arg1, %c0_i32_0 : i32, i32, i32, i32
  }
  func.func @transform_1(%arg0: i32, %arg1: i32, %arg2: memref<3x4xf32, #tpu.memory_space<smem>>, %arg3: memref<3xf32, #tpu.memory_space<smem>>) -> (i32, i32, i32, i32) {
    %c0_i32 = arith.constant 0 : i32
    %c0_i32_0 = arith.constant 0 : i32
    %c0_i32_1 = arith.constant 0 : i32
    return %arg0, %c0_i32, %arg1, %c0_i32_0 : i32, i32, i32, i32
  }
}

</mosaic_0001>

<llo_original>
// kernel: tpu_custom_call.1
$region0: #{tpu_custom_call.1}
  #allocation0 [shape = 'u32[]', space=smem, size = 0x4, offset = 0x4, fixed_abs, tag = 'smem constant byte address 0x4 - core index']
  #allocation1 [shape = 'u32[144,128]{1,0:T(1,128)}', space=vmem, size = 0x12000, scoped, tag = 'internal scratch']
  #allocation2 [shape = 's32[1]{0}', space=sflag, size = 0x4, scoped, tag = 'scoped memory for tpu_custom_call.1']
  #allocation3 [shape = 'u8[2048]{0}', space=smem, size = 0x800, scoped, tag = 'prefetched SMEM operand 0']
  #allocation4 [shape = 'u8[512]{0}', space=smem, size = 0x200, scoped, tag = 'prefetched SMEM operand 1']
  %s0 = inlined_call_operand.hbm [shape: f32[3,4], index: 0, kind: input, shape index: {}]
  %s1 = inlined_call_operand.vmem [shape: f32[3], index: 1, kind: input, shape index: {}]
  %s2 = inlined_call_operand.hbm [shape: f32[2,4,2,128], index: 2, kind: input, shape index: {}]
  %s3 = inlined_call_operand.hbm [shape: f32[2,3,2,128], index: 3, kind: output, shape index: {}]
  %s4 = sld [smem:[#allocation0]]
  $region41: #{tpu_custom_call.1} parent=0
    _
  %s6 = ssub.s32 1, %s4
  %s7 = scalar_select 0, %s6, %s4
  %9 = dma.hbm_to_smem %s0, 64, [#allocation3], [#allocation2]
  %s10 = sshll.u32 %s1, 4
  %s11 = int_to_ptr.vmem [resolvable:$true] %s10
  %13 = dma.vmem_to_smem %s11, 16, [#allocation4], [#allocation2]
  %14 = dma.done [#allocation2], 80
  %15 = sfence
  $region1: #{tpu_custom_call.1} parent=0
    #allocation5 [shape = 'u8[8192]{0}', space=vmem, size = 0x2000, scoped, tag = 'input window, operand 2']
    #allocation6 [shape = 's32[2]{0}', space=sflag, size = 0x8, scoped, tag = 'scoped memory for tpu_custom_call.1']
    #allocation7 [shape = 's32[2]{0}', space=sflag, size = 0x8, scoped, tag = 'scoped memory for tpu_custom_call.1']
    #allocation8 [shape = 'u8[6144]{0}', space=vmem, size = 0x1800, scoped, tag = 'output window, operand 0']
    %16 = vsyncpa [#allocation6], 0
    %s17 = scalar_lea.sflag [#allocation6], 1
    %18 = vsyncpa %s17, 0
    %19 = vsyncpa [#allocation7], 0
    %s20 = scalar_lea.sflag [#allocation7], 1
    %21 = vsyncpa %s20, 0
    loop: start=0, step=1, limit=4
    $region2: #{tpu_custom_call.1} parent=1 // loop_pre_header
      _
    $region3: #{tpu_custom_call.1} parent=1 // loop_header
      %s23 = sphi 0, %s27
      %p24 = scmp.ge.s32.totalorder %s23, 4
      %s30 = sphi 0, %s42
      %s31 = sphi 0, %s38
      %s32 = sphi 0, %s30
      %s33 = sphi 0, %s31
      %s34 = sphi 0, %s32
      %s35 = sphi 0, %s33
      %s47 = sphi 0, %s49
      %s50 = sphi 0, %s47
      %s51 = sphi 0, %s50
      %s67 = sphi 0, %s51
      %s75 = sphi 0, %s77
      %s78 = sphi 0, %s75
      %s79 = sphi 0, %s78
      %s95 = sphi 0, %s79
    $region4: #{tpu_custom_call.1} parent=1 // loop_header_branch
      %26 = sbr.rel (%p24) target = $region8
    $region5: #{tpu_custom_call.1} parent=1 // loop_body
      %s28 = ssub.s32 %s23, 1
      %s29 = ssub.s32 %s23, 2
      %s36 = sadd.s32 1, %s31
      %p37 = scmp.ge.s32.totalorder %s36, 1
      %s38 = scalar_select %p37, 0, %s36
      %s39 = sadd.s32 1, %s30
      %s40 = scalar_select %p37, %s39, %s30
      %p41 = scmp.ge.s32.totalorder %s40, 2
      %s42 = scalar_select %p41, 0, %s40
      %s43 = ssub.s32 %s30, %s42
      %s44 = ssub.s32 %s31, %s38
      %s45 = sor.u32 %s43, %s44
      %p46 = scmp.eq.s32.totalorder %s45, 0
      %s48 = sadd.s32 %s47, 1
      %s49 = scalar_select %p46, %s47, %s48
      %p52 = pneg %p46
      %p53 = scmp.eq.s32.totalorder %s23, 1
      %p54 = por %p52, %p53
      %p55 = scmp.ne.s32.totalorder %s47, %s50
      %p56 = scmp.eq.s32.totalorder %s23, 0
      %p57 = por %p55, %p56
      %p58 = scmp.ne.s32.totalorder %s47, %s50
      %p59 = scmp.eq.s32.totalorder %s28, 1
      %p60 = por %p58, %p59
      %p61 = scmp.ne.s32.totalorder %s50, %s51
      %p62 = scmp.eq.s32.totalorder %s28, 0
      %p63 = por %p61, %p62
      %p64 = scmp.ne.s32.totalorder %s50, %s51
      %p65 = scmp.eq.s32.totalorder %s29, 1
      %p66 = por %p64, %p65
      %p68 = scmp.ne.s32.totalorder %s51, %s67
      %p69 = scmp.eq.s32.totalorder %s29, 0
      %p70 = por %p68, %p69
      %s71 = ssub.s32 %s30, %s42
      %s72 = ssub.s32 %s31, %s38
      %s73 = sor.u32 %s71, %s72
      %p74 = scmp.eq.s32.totalorder %s73, 0
      %s76 = sadd.s32 %s75, 1
      %s77 = scalar_select %p74, %s75, %s76
      %p80 = pneg %p74
      %p81 = scmp.eq.s32.totalorder %s23, 1
      %p82 = por %p80, %p81
      %p83 = scmp.ne.s32.totalorder %s75, %s78
      %p84 = scmp.eq.s32.totalorder %s23, 0
      %p85 = por %p83, %p84
      %p86 = scmp.ne.s32.totalorder %s75, %s78
      %p87 = scmp.eq.s32.totalorder %s28, 1
      %p88 = por %p86, %p87
      %p89 = scmp.ne.s32.totalorder %s78, %s79
      %p90 = scmp.eq.s32.totalorder %s28, 0
      %p91 = por %p89, %p90
      %p92 = scmp.ne.s32.totalorder %s78, %s79
      %p93 = scmp.eq.s32.totalorder %s29, 1
      %p94 = por %p92, %p93
      %p96 = scmp.ne.s32.totalorder %s79, %s95
      %p97 = scmp.eq.s32.totalorder %s29, 0
      %p98 = por %p96, %p97
      %p99 = scmp.le.s32.totalorder 1, %s23
      %p100 = scmp.lt.s32.totalorder %s23, 3
      %p101 = pnand %p99, %p100
      %p102 = pneg %p101
      // Predicated region
      $region9: #{tpu_custom_call.1} parent=5 // pred_check
        _
      $region10: #{tpu_custom_call.1} parent=5 // pred_check_branch
        %104 = sbr.rel (%p101) target = $region12
      $region11: #{tpu_custom_call.1} parent=5 // pred_region
        %s105 = ssub.s32 %s23, 1
      $region12: #{tpu_custom_call.1} parent=5 // pred_fallthru
        _
      %p106 = scmp.lt.s32.totalorder %s23, 2
      // Predicated region
      $region13: #{tpu_custom_call.1} parent=5 // pred_check
        %p107 = pneg %p106
      $region14: #{tpu_custom_call.1} parent=5 // pred_check_branch
        %109 = sbr.rel (%p107) target = $region16
      $region15: #{tpu_custom_call.1} parent=5 // pred_region
        // Predicated region
        $region17: #{tpu_custom_call.1} parent=15 // pred_check
          %p110 = pneg %p57
        $region18: #{tpu_custom_call.1} parent=15 // pred_check_branch
          %112 = sbr.rel (%p110) target = $region20
        $region19: #{tpu_custom_call.1} parent=15 // pred_region
          %s113 = sand.u32 %s47, 1
          %s114 = scalar_lea.sflag [#allocation6], %s113
          %s115 = sand.u32 %s47, 1
          %s116 = smul.addr %s115, 8
          %s117 = scalar_lea.vmem [#allocation5], %s116
          %s119 = ssub.s32 128, 128
          %120 = vsyncadd %s114, %s119
          %s121 = smul.addr %s30, 4
          %s122 = sadd.s32 %s31, %s121
          %s123 = smul.addr %s122, 32
          %s124 = scalar_lea.hbm %s2, %s123
          %s125 = sshll.u32 %s117, 4
          %s126 = int_to_ptr.vmem [resolvable:$true] %s125
          %131 = dma.hbm_to_vmem [thread:$0]  %s124, 128, %s126, %s114, 32, 32, 2
        $region20: #{tpu_custom_call.1} parent=15 // pred_fallthru
          _
      $region16: #{tpu_custom_call.1} parent=5 // pred_fallthru
        _
      %p132 = scmp.le.s32.totalorder 1, %s23
      %p133 = scmp.lt.s32.totalorder %s23, 3
      %p134 = pnand %p132, %p133
      %p135 = pneg %p134
      // Predicated region
      $region21: #{tpu_custom_call.1} parent=5 // pred_check
        _
      $region22: #{tpu_custom_call.1} parent=5 // pred_check_branch
        %137 = sbr.rel (%p134) target = $region24
      $region23: #{tpu_custom_call.1} parent=5 // pred_region
        %s138 = ssub.s32 %s23, 1
        %s139 = sand.u32 %s50, 1
        %s140 = scalar_lea.sflag [#allocation6], %s139
        %s141 = sand.u32 %s50, 1
        %s142 = smul.addr %s141, 8
        %s143 = scalar_lea.vmem [#allocation5], %s142
        // Predicated region
        $region25: #{tpu_custom_call.1} parent=23 // pred_check
          %p144 = pneg %p63
        $region26: #{tpu_custom_call.1} parent=23 // pred_check_branch
          %146 = sbr.rel (%p144) target = $region28
        $region27: #{tpu_custom_call.1} parent=23 // pred_region
          %147 = dma.done %s140, 128
        $region28: #{tpu_custom_call.1} parent=23 // pred_fallthru
          _
        %s148 = sand.u32 %s50, 1
        %s149 = scalar_lea.sflag [#allocation6], %s148
        %s150 = sand.u32 %s50, 1
        %s151 = smul.addr %s150, 8
        %s152 = scalar_lea.vmem [#allocation5], %s151
        %p153 = pneg %p63
        %p154 = pneg %p60
        %p155 = pneg %p91
        %p156 = pneg %p88
        %s157 = sand.u32 %s78, 1
        %s158 = scalar_lea.sflag [#allocation7], %s157
        %s159 = sand.u32 %s78, 1
        %s160 = smul.addr %s159, 6
        %s161 = scalar_lea.vmem [#allocation8], %s160
        %s162 = sld [smem:[#allocation3]]
        %s163 = sld [smem:[#allocation3 + $0x1]]
        %s164 = sld [smem:[#allocation3 + $0x2]]
        %s165 = sld [smem:[#allocation3 + $0x3]]
        %s166 = sld [smem:[#allocation3 + $0x80]]
        %s167 = sld [smem:[#allocation3 + $0x81]]
        %s168 = sld [smem:[#allocation3 + $0x82]]
        %s169 = sld [smem:[#allocation3 + $0x83]]
        %s170 = sld [smem:[#allocation3 + $0x100]]
        %s171 = sld [smem:[#allocation3 + $0x101]]
        %s172 = sld [smem:[#allocation3 + $0x102]]
        %s173 = sld [smem:[#allocation3 + $0x103]]
        %s174 = sld [smem:[#allocation4]]
        %s175 = sld [smem:[#allocation4 + $0x1]]
        %s176 = sld [smem:[#allocation4 + $0x2]]
        %v177 = vld [vmem:[%s143] sm:$0x3]
        %v178 = vstv %s162
        %v179 = vmul.f32 %v177, %v178
        %v180 = vstv %s174
        %v181 = vadd.f32 %v179, %v180
        %s182 = scalar_lea.vmem %s143, 2 [#allocation5]
        %v183 = vld [vmem:[%s182] sm:$0x3]
        %v184 = vstv %s163
        %v185 = vmul.f32 %v183, %v184
        %v186 = vadd.f32 %v181, %v185
        %s187 = scalar_lea.vmem %s143, 4 [#allocation5]
        %v188 = vld [vmem:[%s187] sm:$0x3]
        %v189 = vstv %s164
        %v190 = vmul.f32 %v188, %v189
        %v191 = vadd.f32 %v186, %v190
        %s192 = scalar_lea.vmem %s143, 6 [#allocation5]
        %v193 = vld [vmem:[%s192] sm:$0x3]
        %v194 = vstv %s165
        %v195 = vmul.f32 %v193, %v194
        %v196 = vadd.f32 %v191, %v195
        %v197 = vtanh.pop %v196
        %198 = vst [vmem:[%s161] sm:$0x3] %v197
        %v199 = vld [vmem:[%s143] sm:$0x3]
        %v200 = vstv %s166
        %v201 = vmul.f32 %v199, %v200
        %v202 = vstv %s175
        %v203 = vadd.f32 %v201, %v202
        %v204 = vld [vmem:[%s182] sm:$0x3]
        %v205 = vstv %s167
        %v206 = vmul.f32 %v204, %v205
        %v207 = vadd.f32 %v203, %v206
        %v208 = vld [vmem:[%s187] sm:$0x3]
        %v209 = vstv %s168
        %v210 = vmul.f32 %v208, %v209
        %v211 = vadd.f32 %v207, %v210
        %v212 = vld [vmem:[%s192] sm:$0x3]
        %v213 = vstv %s169
        %v214 = vmul.f32 %v212, %v213
        %v215 = vadd.f32 %v211, %v214
        %v216 = vtanh.pop %v215
        %s217 = scalar_lea.vmem %s161, 2 [#allocation8]
        %218 = vst [vmem:[%s217] sm:$0x3] %v216
        %v219 = vld [vmem:[%s143] sm:$0x3]
        %v220 = vstv %s170
        %v221 = vmul.f32 %v219, %v220
        %v222 = vstv %s176
        %v223 = vadd.f32 %v221, %v222
        %v224 = vld [vmem:[%s182] sm:$0x3]
        %v225 = vstv %s171
        %v226 = vmul.f32 %v224, %v225
        %v227 = vadd.f32 %v223, %v226
        %v228 = vld [vmem:[%s187] sm:$0x3]
        %v229 = vstv %s172
        %v230 = vmul.f32 %v228, %v229
        %v231 = vadd.f32 %v227, %v230
        %v232 = vld [vmem:[%s192] sm:$0x3]
        %v233 = vstv %s173
        %v234 = vmul.f32 %v232, %v233
        %v235 = vadd.f32 %v231, %v234
        %v236 = vtanh.pop %v235
        %s237 = scalar_lea.vmem %s161, 4 [#allocation8]
        %238 = vst [vmem:[%s237] sm:$0x3] %v236
        %s239 = sand.u32 %s78, 1
        %s240 = scalar_lea.sflag [#allocation7], %s239
        %s241 = sand.u32 %s78, 1
        %s242 = smul.addr %s241, 6
        %s243 = scalar_lea.vmem [#allocation8], %s242
        // Predicated region
        $region29: #{tpu_custom_call.1} parent=23 // pred_check
          %p244 = pneg %p88
        $region30: #{tpu_custom_call.1} parent=23 // pred_check_branch
          %246 = sbr.rel (%p244) target = $region32
        $region31: #{tpu_custom_call.1} parent=23 // pred_region
          %s248 = ssub.s32 96, 96
          %249 = vsyncadd %s240, %s248
          %s250 = smul.addr %s32, 3
          %s251 = sadd.s32 %s33, %s250
          %s252 = smul.addr %s251, 32
          %s253 = scalar_lea.hbm %s3, %s252
          %s254 = sshll.u32 %s243, 4
          %s255 = int_to_ptr.vmem [resolvable:$true] %s254
          %260 = dma.vmem_to_hbm [thread:$0]  %s255, 96, %s253, %s240, 32, 32, 2
        $region32: #{tpu_custom_call.1} parent=23 // pred_fallthru
          _
      $region24: #{tpu_custom_call.1} parent=5 // pred_fallthru
        _
      %p261 = scmp.le.s32.totalorder 2, %s23
      // Predicated region
      $region33: #{tpu_custom_call.1} parent=5 // pred_check
        %p262 = pneg %p261
      $region34: #{tpu_custom_call.1} parent=5 // pred_check_branch
        %264 = sbr.rel (%p262) target = $region36
      $region35: #{tpu_custom_call.1} parent=5 // pred_region
        %s265 = ssub.s32 %s23, 2
        // Predicated region
        $region37: #{tpu_custom_call.1} parent=35 // pred_check
          %p266 = pneg %p94
        $region38: #{tpu_custom_call.1} parent=35 // pred_check_branch
          %268 = sbr.rel (%p266) target = $region40
        $region39: #{tpu_custom_call.1} parent=35 // pred_region
          %s269 = sand.u32 %s79, 1
          %s270 = scalar_lea.sflag [#allocation7], %s269
          %s271 = sand.u32 %s79, 1
          %s272 = smul.addr %s271, 6
          %s273 = scalar_lea.vmem [#allocation8], %s272
          %274 = dma.done %s270, 96
        $region40: #{tpu_custom_call.1} parent=35 // pred_fallthru
          _
      $region36: #{tpu_custom_call.1} parent=5 // pred_fallthru
        _
    $region6: #{tpu_custom_call.1} parent=1 // loop_footer
      %s27 = sadd.s32 1, %s23
    $region7: #{tpu_custom_call.1} parent=1 // loop_footer_branch
      %22 = sbr.rel target = $region3
    $region8: #{tpu_custom_call.1} parent=1 // loop_exit
      _
    %275 = vsyncpa [#allocation6], 1
    %s276 = scalar_lea.sflag [#allocation6], 1
    %277 = vsyncpa %s276, 1
    %278 = vsyncpa [#allocation7], 1
    %s279 = scalar_lea.sflag [#allocation7], 1
    %280 = vsyncpa %s279, 1

</llo_original>
